<compile_context>
chip_gen: v6e
topology: v6e:2x2x1
jax: 0.10.0
libtpu: 0.0.40
codegen_flags: <defaults>
</compile_context>

<pallas_src>
import functools

import jax
import jax.numpy as jnp
from jax.experimental import pallas as pl
from jax.experimental.pallas import tpu as pltpu

N_EMBD = 128
HIDDEN = 4 * N_EMBD
DROPOUT_RATE = 0.1  # unused at inference (identity)


def _round_up(a, b):
    return ((a + b - 1) // b) * b


def _default_bf16_epilogue():
    # v6e/v7x have a bf16 VPU; v5e (and older) do not -> keep the f32 epilogue
    # there. Detection is best-effort; bf16 epilogue is always correct.
    try:
        kind = jax.devices()[0].device_kind.lower()
        return "v5" not in kind
    except Exception:  # pragma: no cover
        return True


def _ffn_kernel(x_ref, w1_ref, b1_ref, w2_ref, b2_ref, o_ref, *, bf16_epilogue):
    # x_ref: (TM, C) input dtype, w1_ref: (C, 4C) bf16, b1_ref: (1, 4C) f32,
    # w2_ref: (4C, C) bf16, b2_ref: (1, C) f32, o_ref: (TM, C) output dtype.
    x = x_ref[...]
    if x.dtype != jnp.bfloat16:
        x = x.astype(jnp.bfloat16)                        # bf16 MXU operand
    h = jnp.dot(x, w1_ref[...], preferred_element_type=jnp.float32)
    if bf16_epilogue:
        # bias-add + ReLU in bf16 (v6e/v7x bf16 VALU); halves the h temp.
        h = jnp.maximum(h.astype(jnp.bfloat16) + b1_ref[...].astype(jnp.bfloat16), 0.0)
    else:
        # v5e: f32-only VPU path, single cast to bf16 for matmul-2.
        h = jnp.maximum(h + b1_ref[...], 0.0).astype(jnp.bfloat16)
    y = jnp.dot(h, w2_ref[...], preferred_element_type=jnp.float32)
    y = y + b2_ref[...]
    o_ref[...] = y.astype(o_ref.dtype)


def feedforward(x, w1, b1, w2, b2, *, tile_m=2048, bf16_epilogue=None,
                vmem_limit_bytes=48 * 1024 * 1024):
    """x: (..., n_embd). Returns same shape/dtype as x."""
    if bf16_epilogue is None:
        bf16_epilogue = _default_bf16_epilogue()

    orig_shape = x.shape
    C = orig_shape[-1]
    H = w1.shape[1]
    x2d = x.reshape(-1, C)
    N = x2d.shape[0]

    # Weights as bf16 MXU operands (no-op if already bf16), biases in f32.
    w1 = w1.astype(jnp.bfloat16)
    w2 = w2.astype(jnp.bfloat16)
    b1 = b1.astype(jnp.float32)
    b2 = b2.astype(jnp.float32)

    # Row-tile selection:
    #   * clamp so the grid has >=2 steps when possible (v7x shards "parallel"
    #     grid axes across its 2 TensorCores),
    #   * keep tm a multiple of 8 sublanes,
    #   * when the grid has >2 steps, round the step count to an even number so
    #     the two v7x cores stay balanced.
    # No padding of x: Pallas masks the partial boundary tile.
    half = _round_up(pl.cdiv(N, 2), 8)
    tm = max(8, min(_round_up(tile_m, 8), half))
    steps = pl.cdiv(N, tm)
    if steps > 2 and steps % 2 == 1:
        steps += 1
        tm = max(8, _round_up(pl.cdiv(N, steps), 8))
    grid = (pl.cdiv(N, tm),)

    x_bytes = x2d.size * x2d.dtype.itemsize
    out_bytes = N * C * x.dtype.itemsize
    w_bytes = (w1.size * w1.dtype.itemsize + w2.size * w2.dtype.itemsize
               + b1.size * b1.dtype.itemsize + b2.size * b2.dtype.itemsize)
    cost = pl.CostEstimate(
        flops=4 * N * C * H,              # two matmuls: 2*N*C*H each
        transcendentals=0,
        bytes_accessed=int(x_bytes + out_bytes + w_bytes),
    )

    kernel = functools.partial(_ffn_kernel, bf16_epilogue=bf16_epilogue)

    out = pl.pallas_call(
        kernel,
        out_shape=jax.ShapeDtypeStruct((N, C), x.dtype),
        grid_spec=pltpu.PrefetchScalarGridSpec(
            num_scalar_prefetch=0,
            grid=grid,
            in_specs=[
                pl.BlockSpec((tm, C), lambda i: (i, 0)),   # x row tile
                pl.BlockSpec((C, H), lambda i: (0, 0)),    # W1 (resident, bf16)
                pl.BlockSpec((1, H), lambda i: (0, 0)),    # b1 (f32)
                pl.BlockSpec((H, C), lambda i: (0, 0)),    # W2 (resident, bf16)
                pl.BlockSpec((1, C), lambda i: (0, 0)),    # b2 (f32)
            ],
            out_specs=pl.BlockSpec((tm, C), lambda i: (i, 0)),
        ),
        compiler_params=pltpu.CompilerParams(
            dimension_semantics=("parallel",),
            vmem_limit_bytes=vmem_limit_bytes,
        ),
        cost_estimate=cost,
    )(x2d, w1, b1, w2, b2)

    return out.reshape(orig_shape)


def init_params(key, n_embd=N_EMBD):
    """Deterministic init mirroring PyTorch nn.Linear default U(-1/sqrt(fan_in), +).

    Weights are stored bf16 (MXU-native), biases f32.
    """
    k1, k2, k3, k4 = jax.random.split(key, 4)
    hid = 4 * n_embd
    bound1 = 1.0 / jnp.sqrt(n_embd)
    bound2 = 1.0 / jnp.sqrt(hid)
    # stored as (in, out) so the kernel does x @ W
    w1 = jax.random.uniform(k1, (n_embd, hid), jnp.float32, -bound1, bound1)
    b1 = jax.random.uniform(k2, (1, hid), jnp.float32, -bound1, bound1)
    w2 = jax.random.uniform(k3, (hid, n_embd), jnp.float32, -bound2, bound2)
    b2 = jax.random.uniform(k4, (1, n_embd), jnp.float32, -bound2, bound2)
    return w1.astype(jnp.bfloat16), b1, w2.astype(jnp.bfloat16), b2


if __name__ == "__main__":
    key = jax.random.PRNGKey(0)
    kp, kx = jax.random.split(key)
    w1, b1, w2, b2 = init_params(kp)

    # small input: batch=2, seq=8, n_embd=128; activations bf16 end-to-end
    # (produced bf16, consumed bf16 — no wrapper-side cast).
    x = jax.random.normal(kx, (2, 8, N_EMBD), jnp.bfloat16)

    y = feedforward(x, w1, b1, w2, b2)
    y = jax.block_until_ready(y)

    # reference check in plain JAX (bf16 MXU operands, f32 accumulate,
    # h rounded to bf16 before matmul-2, output rounded to x.dtype)
    xf = x.astype(jnp.float32)
    w1f = w1.astype(jnp.float32)
    w2f = w2.astype(jnp.float32)
    h_ref = jnp.maximum(xf @ w1f + b1[0], 0.0)
    h_ref = h_ref.astype(jnp.bfloat16).astype(jnp.float32)
    ref = h_ref @ w2f + b2[0]

    assert y.shape == x.shape
    assert y.dtype == x.dtype
    assert jnp.allclose(y.astype(jnp.float32), ref, atol=5e-2, rtol=5e-2), \
        "mismatch vs reference"

    print("KERNEL_OK")
</pallas_src>

<mosaic_0001>
module attributes {stable_mosaic.version = 11 : i64} {
  func.func @_ffn_kernel(%arg0: i32, %arg1: memref<8x128xbf16, #tpu.memory_space<vmem>>, %arg2: memref<128x512xbf16, #tpu.memory_space<vmem>>, %arg3: memref<1x512xf32, #tpu.memory_space<vmem>>, %arg4: memref<512x128xbf16, #tpu.memory_space<vmem>>, %arg5: memref<1x128xf32, #tpu.memory_space<vmem>>, %arg6: memref<8x128xbf16, #tpu.memory_space<vmem>>) attributes {dimension_semantics = [#tpu.dimension_semantics<parallel>], iteration_bounds = array<i64: 2>, scalar_prefetch = 0 : i64, scratch_operands = 0 : i64, tpu.core_type = #tpu.core_type<tc>, window_params = [{transform_indices = @transform_0, window_bounds = array<i64: 8, 128>}, {pipeline_mode = #tpu.pipeline_mode<synchronous>, transform_indices = @transform_1, window_bounds = array<i64: 128, 512>}, {pipeline_mode = #tpu.pipeline_mode<synchronous>, transform_indices = @transform_2, window_bounds = array<i64: 1, 512>}, {pipeline_mode = #tpu.pipeline_mode<synchronous>, transform_indices = @transform_3, window_bounds = array<i64: 512, 128>}, {pipeline_mode = #tpu.pipeline_mode<synchronous>, transform_indices = @transform_4, window_bounds = array<i64: 1, 128>}, {transform_indices = @transform_5, window_bounds = array<i64: 8, 128>}]} {
    %c0 = arith.constant 0 : index
    %c0_0 = arith.constant 0 : index
    %0 = vector.load %arg1[%c0, %c0_0] : memref<8x128xbf16, #tpu.memory_space<vmem>>, vector<8x128xbf16>
    %c0_1 = arith.constant 0 : index
    %c0_2 = arith.constant 0 : index
    %1 = vector.load %arg2[%c0_1, %c0_2] : memref<128x512xbf16, #tpu.memory_space<vmem>>, vector<128x512xbf16>
    %cst = arith.constant dense<0.000000e+00> : vector<8x512xf32>
    %2 = tpu.matmul %0, %1, %cst {dimension_numbers = #tpu.dot_dimension_numbers<[1], [0], [0], [1], [0, 0, 1, 1], [], []>} : vector<8x128xbf16>, vector<128x512xbf16>, vector<8x512xf32> -> vector<8x512xf32>
    %3 = arith.truncf %2 : vector<8x512xf32> to vector<8x512xbf16>
    %c0_3 = arith.constant 0 : index
    %c0_4 = arith.constant 0 : index
    %4 = vector.load %arg3[%c0_3, %c0_4] : memref<1x512xf32, #tpu.memory_space<vmem>>, vector<1x512xf32>
    %5 = arith.truncf %4 : vector<1x512xf32> to vector<1x512xbf16>
    %6 = vector.broadcast %5 : vector<1x512xbf16> to vector<8x512xbf16>
    %7 = arith.addf %3, %6 : vector<8x512xbf16>
    %cst_5 = arith.constant 0.000000e+00 : bf16
    %8 = vector.broadcast %cst_5 : bf16 to vector<8x512xbf16>
    %9 = arith.maximumf %7, %8 : vector<8x512xbf16>
    %c0_6 = arith.constant 0 : index
    %c0_7 = arith.constant 0 : index
    %10 = vector.load %arg4[%c0_6, %c0_7] : memref<512x128xbf16, #tpu.memory_space<vmem>>, vector<512x128xbf16>
    %cst_8 = arith.constant dense<0.000000e+00> : vector<8x128xf32>
    %11 = tpu.matmul %9, %10, %cst_8 {dimension_numbers = #tpu.dot_dimension_numbers<[1], [0], [0], [1], [0, 0, 1, 1], [], []>} : vector<8x512xbf16>, vector<512x128xbf16>, vector<8x128xf32> -> vector<8x128xf32>
    %c0_9 = arith.constant 0 : index
    %c0_10 = arith.constant 0 : index
    %12 = vector.load %arg5[%c0_9, %c0_10] : memref<1x128xf32, #tpu.memory_space<vmem>>, vector<1x128xf32>
    %13 = vector.broadcast %12 : vector<1x128xf32> to vector<8x128xf32>
    %14 = arith.addf %11, %13 : vector<8x128xf32>
    %15 = arith.truncf %14 : vector<8x128xf32> to vector<8x128xbf16>
    %c0_11 = arith.constant 0 : index
    %c0_12 = arith.constant 0 : index
    %16 = vector.load %arg6[%c0_11, %c0_12] : memref<8x128xbf16, #tpu.memory_space<vmem>>, vector<8x128xbf16>
    tpu.vector_store %arg6[%c0_11, %c0_12], %15 {strides = array<i32>} : memref<8x128xbf16, #tpu.memory_space<vmem>>, vector<8x128xbf16>,
    return
  }
  func.func @transform_0(%arg0: i32) -> (i32, i32) {
    %c0_i32 = arith.constant 0 : i32
    %c0_i32_0 = arith.constant 0 : i32
    return %arg0, %c0_i32 : i32, i32
  }
  func.func @transform_1(%arg0: i32) -> (i32, i32) {
    %c0_i32 = arith.constant 0 : i32
    %c0_i32_0 = arith.constant 0 : i32
    %c0_i32_1 = arith.constant 0 : i32
    return %c0_i32, %c0_i32_0 : i32, i32
  }
  func.func @transform_2(%arg0: i32) -> (i32, i32) {
    %c0_i32 = arith.constant 0 : i32
    %c0_i32_0 = arith.constant 0 : i32
    %c0_i32_1 = arith.constant 0 : i32
    return %c0_i32, %c0_i32_0 : i32, i32
  }
  func.func @transform_3(%arg0: i32) -> (i32, i32) {
    %c0_i32 = arith.constant 0 : i32
    %c0_i32_0 = arith.constant 0 : i32
    %c0_i32_1 = arith.constant 0 : i32
    return %c0_i32, %c0_i32_0 : i32, i32
  }
  func.func @transform_4(%arg0: i32) -> (i32, i32) {
    %c0_i32 = arith.constant 0 : i32
    %c0_i32_0 = arith.constant 0 : i32
    %c0_i32_1 = arith.constant 0 : i32
    return %c0_i32, %c0_i32_0 : i32, i32
  }
  func.func @transform_5(%arg0: i32) -> (i32, i32) {
    %c0_i32 = arith.constant 0 : i32
    %c0_i32_0 = arith.constant 0 : i32
    return %arg0, %c0_i32 : i32, i32
  }
}

</mosaic_0001>

<llo_original>
// kernel: tpu_custom_call.1
$region0: #{tpu_custom_call.1}
  #allocation0 [shape = 'u32[]', space=smem, size = 0x4, offset = 0x4, fixed_abs, tag = 'smem constant byte address 0x4 - core index']
  #allocation1 [shape = 'u32[144,128]{1,0:T(1,128)}', space=vmem, size = 0x12000, scoped, tag = 'internal scratch']
  %s0 = inlined_call_operand.hbm [shape: bf16[16,128], index: 0, kind: input, shape index: {}]
  %s1 = inlined_call_operand.hbm [shape: bf16[128,512], index: 1, kind: input, shape index: {}]
  %s2 = inlined_call_operand.hbm [shape: f32[1,512], index: 2, kind: input, shape index: {}]
  %s3 = inlined_call_operand.hbm [shape: bf16[512,128], index: 3, kind: input, shape index: {}]
  %s4 = inlined_call_operand.vmem [shape: f32[1,128], index: 4, kind: input, shape index: {}]
  %s5 = inlined_call_operand.hbm [shape: bf16[16,128], index: 5, kind: output, shape index: {}]
  %s6 = sld [smem:[#allocation0]]
  $region69: #{tpu_custom_call.1} parent=0
    _
  %s8 = ssub.s32 1, %s6
  %s9 = scalar_select 0, %s8, %s6
  $region1: #{tpu_custom_call.1} parent=0
    #allocation2 [shape = 'u8[4096]{0}', space=vmem, size = 0x1000, scoped, tag = 'input window, operand 0']
    #allocation3 [shape = 's32[2]{0}', space=sflag, size = 0x8, scoped, tag = 'scoped memory for tpu_custom_call.1']
    #allocation4 [shape = 's32[2]{0}', space=sflag, size = 0x8, scoped, tag = 'scoped memory for tpu_custom_call.1']
    #allocation5 [shape = 'u8[131072]{0}', space=vmem, size = 0x20000, scoped, tag = 'input window, operand 1, single buffered']
    #allocation6 [shape = 's32[1]{0}', space=sflag, size = 0x4, scoped, tag = 'scoped memory for tpu_custom_call.1']
    #allocation7 [shape = 'u8[2048]{0}', space=vmem, size = 0x800, scoped, tag = 'input window, operand 2, single buffered']
    #allocation8 [shape = 'u8[131072]{0}', space=vmem, size = 0x20000, scoped, tag = 'input window, operand 3, single buffered']
    #allocation9 [shape = 's32[1]{0}', space=sflag, size = 0x4, scoped, tag = 'scoped memory for tpu_custom_call.1']
    #allocation10 [shape = 'u8[4096]{0}', space=vmem, size = 0x1000, scoped, tag = 'output window, operand 0']
    %10 = vsyncpa [#allocation3], 0
    %s11 = scalar_lea.sflag [#allocation3], 1
    %12 = vsyncpa %s11, 0
    %13 = vsyncpa [#allocation6], 0
    %14 = vsyncpa [#allocation9], 0
    %15 = vsyncpa [#allocation4], 0
    %s16 = scalar_lea.sflag [#allocation4], 1
    %17 = vsyncpa %s16, 0
    loop: start=0, step=1, limit=4
    $region2: #{tpu_custom_call.1} parent=1 // loop_pre_header
      _
    $region3: #{tpu_custom_call.1} parent=1 // loop_header
      %s19 = sphi 0, %s23
      %p20 = scmp.ge.s32.totalorder %s19, 4
      %s29 = sphi 0, %s31
      %s32 = sphi 0, %s29
      %s33 = sphi 0, %s32
      %s49 = sphi 0, %s33
      %s53 = sphi 0, %s53
      %s55 = sphi 0, %s53
      %s56 = sphi 0, %s55
      %s70 = sphi 0, %s56
      %s74 = sphi 0, %s74
      %s76 = sphi 0, %s74
      %s77 = sphi 0, %s76
      %s91 = sphi 0, %s77
      %s95 = sphi 0, %s95
      %s97 = sphi 0, %s95
      %s98 = sphi 0, %s97
      %s112 = sphi 0, %s98
      %s116 = sphi 0, %s116
      %s118 = sphi 0, %s116
      %s119 = sphi 0, %s118
      %s133 = sphi 0, %s119
      %s139 = sphi 0, %s141
      %s142 = sphi 0, %s139
      %s143 = sphi 0, %s142
      %s159 = sphi 0, %s143
    $region4: #{tpu_custom_call.1} parent=1 // loop_header_branch
      %22 = sbr.rel (%p20) target = $region8
    $region5: #{tpu_custom_call.1} parent=1 // loop_body
      %s24 = ssub.s32 %s19, 1
      %s25 = ssub.s32 %s19, 2
      %s26 = sadd.s32 %s19, 1
      %s27 = ssub.s32 %s19, %s26
      %p28 = scmp.eq.s32.totalorder %s27, 0
      %s30 = sadd.s32 %s29, 1
      %s31 = scalar_select %p28, %s29, %s30
      %p34 = pneg %p28
      %p35 = scmp.eq.s32.totalorder %s19, 1
      %p36 = por %p34, %p35
      %p37 = scmp.ne.s32.totalorder %s29, %s32
      %p38 = scmp.eq.s32.totalorder %s19, 0
      %p39 = por %p37, %p38
      %p40 = scmp.ne.s32.totalorder %s29, %s32
      %p41 = scmp.eq.s32.totalorder %s24, 1
      %p42 = por %p40, %p41
      %p43 = scmp.ne.s32.totalorder %s32, %s33
      %p44 = scmp.eq.s32.totalorder %s24, 0
      %p45 = por %p43, %p44
      %p46 = scmp.ne.s32.totalorder %s32, %s33
      %p47 = scmp.eq.s32.totalorder %s25, 1
      %p48 = por %p46, %p47
      %p50 = scmp.ne.s32.totalorder %s33, %s49
      %p51 = scmp.eq.s32.totalorder %s25, 0
      %p52 = por %p50, %p51
      %s54 = sadd.s32 %s53, 1
      %p57 = scmp.eq.s32.totalorder %s19, 1
      %p58 = scmp.ne.s32.totalorder %s53, %s55
      %p59 = scmp.eq.s32.totalorder %s19, 0
      %p60 = por %p58, %p59
      %p61 = scmp.ne.s32.totalorder %s53, %s55
      %p62 = scmp.eq.s32.totalorder %s24, 1
      %p63 = por %p61, %p62
      %p64 = scmp.ne.s32.totalorder %s55, %s56
      %p65 = scmp.eq.s32.totalorder %s24, 0
      %p66 = por %p64, %p65
      %p67 = scmp.ne.s32.totalorder %s55, %s56
      %p68 = scmp.eq.s32.totalorder %s25, 1
      %p69 = por %p67, %p68
      %p71 = scmp.ne.s32.totalorder %s56, %s70
      %p72 = scmp.eq.s32.totalorder %s25, 0
      %p73 = por %p71, %p72
      %s75 = sadd.s32 %s74, 1
      %p78 = scmp.eq.s32.totalorder %s19, 1
      %p79 = scmp.ne.s32.totalorder %s74, %s76
      %p80 = scmp.eq.s32.totalorder %s19, 0
      %p81 = por %p79, %p80
      %p82 = scmp.ne.s32.totalorder %s74, %s76
      %p83 = scmp.eq.s32.totalorder %s24, 1
      %p84 = por %p82, %p83
      %p85 = scmp.ne.s32.totalorder %s76, %s77
      %p86 = scmp.eq.s32.totalorder %s24, 0
      %p87 = por %p85, %p86
      %p88 = scmp.ne.s32.totalorder %s76, %s77
      %p89 = scmp.eq.s32.totalorder %s25, 1
      %p90 = por %p88, %p89
      %p92 = scmp.ne.s32.totalorder %s77, %s91
      %p93 = scmp.eq.s32.totalorder %s25, 0
      %p94 = por %p92, %p93
      %s96 = sadd.s32 %s95, 1
      %p99 = scmp.eq.s32.totalorder %s19, 1
      %p100 = scmp.ne.s32.totalorder %s95, %s97
      %p101 = scmp.eq.s32.totalorder %s19, 0
      %p102 = por %p100, %p101
      %p103 = scmp.ne.s32.totalorder %s95, %s97
      %p104 = scmp.eq.s32.totalorder %s24, 1
      %p105 = por %p103, %p104
      %p106 = scmp.ne.s32.totalorder %s97, %s98
      %p107 = scmp.eq.s32.totalorder %s24, 0
      %p108 = por %p106, %p107
      %p109 = scmp.ne.s32.totalorder %s97, %s98
      %p110 = scmp.eq.s32.totalorder %s25, 1
      %p111 = por %p109, %p110
      %p113 = scmp.ne.s32.totalorder %s98, %s112
      %p114 = scmp.eq.s32.totalorder %s25, 0
      %p115 = por %p113, %p114
      %s117 = sadd.s32 %s116, 1
      %p120 = scmp.eq.s32.totalorder %s19, 1
      %p121 = scmp.ne.s32.totalorder %s116, %s118
      %p122 = scmp.eq.s32.totalorder %s19, 0
      %p123 = por %p121, %p122
      %p124 = scmp.ne.s32.totalorder %s116, %s118
      %p125 = scmp.eq.s32.totalorder %s24, 1
      %p126 = por %p124, %p125
      %p127 = scmp.ne.s32.totalorder %s118, %s119
      %p128 = scmp.eq.s32.totalorder %s24, 0
      %p129 = por %p127, %p128
      %p130 = scmp.ne.s32.totalorder %s118, %s119
      %p131 = scmp.eq.s32.totalorder %s25, 1
      %p132 = por %p130, %p131
      %p134 = scmp.ne.s32.totalorder %s119, %s133
      %p135 = scmp.eq.s32.totalorder %s25, 0
      %p136 = por %p134, %p135
      %s137 = ssub.s32 %s19, %s26
      %p138 = scmp.eq.s32.totalorder %s137, 0
      %s140 = sadd.s32 %s139, 1
      %s141 = scalar_select %p138, %s139, %s140
      %p144 = pneg %p138
      %p145 = scmp.eq.s32.totalorder %s19, 1
      %p146 = por %p144, %p145
      %p147 = scmp.ne.s32.totalorder %s139, %s142
      %p148 = scmp.eq.s32.totalorder %s19, 0
      %p149 = por %p147, %p148
      %p150 = scmp.ne.s32.totalorder %s139, %s142
      %p151 = scmp.eq.s32.totalorder %s24, 1
      %p152 = por %p150, %p151
      %p153 = scmp.ne.s32.totalorder %s142, %s143
      %p154 = scmp.eq.s32.totalorder %s24, 0
      %p155 = por %p153, %p154
      %p156 = scmp.ne.s32.totalorder %s142, %s143
      %p157 = scmp.eq.s32.totalorder %s25, 1
      %p158 = por %p156, %p157
      %p160 = scmp.ne.s32.totalorder %s143, %s159
      %p161 = scmp.eq.s32.totalorder %s25, 0
      %p162 = por %p160, %p161
      %p163 = scmp.le.s32.totalorder 1, %s19
      %p164 = scmp.lt.s32.totalorder %s19, 3
      %p165 = pnand %p163, %p164
      %p166 = pneg %p165
      // Predicated region
      $region9: #{tpu_custom_call.1} parent=5 // pred_check
        _
      $region10: #{tpu_custom_call.1} parent=5 // pred_check_branch
        %168 = sbr.rel (%p165) target = $region12
      $region11: #{tpu_custom_call.1} parent=5 // pred_region
        %s169 = ssub.s32 %s19, 1
        // Predicated region
        $region13: #{tpu_custom_call.1} parent=11 // pred_check
          %p170 = pneg %p66
        $region14: #{tpu_custom_call.1} parent=11 // pred_check_branch
          %172 = sbr.rel (%p170) target = $region16
        $region15: #{tpu_custom_call.1} parent=11 // pred_region
          %s174 = ssub.s32 4096, 4096
          %175 = vsyncadd [#allocation6], %s174
          %s176 = sshll.u32 [#allocation5], 4
          %s177 = int_to_ptr.vmem [resolvable:$true] %s176
          %182 = dma.hbm_to_vmem [thread:$0]  %s1, 4096, %s177, [#allocation6], 256, 256, 16
        $region16: #{tpu_custom_call.1} parent=11 // pred_fallthru
          _
        // Predicated region
        $region17: #{tpu_custom_call.1} parent=11 // pred_check
          %p183 = pneg %p87
        $region18: #{tpu_custom_call.1} parent=11 // pred_check_branch
          %185 = sbr.rel (%p183) target = $region20
        $region19: #{tpu_custom_call.1} parent=11 // pred_region
          %s187 = ssub.s32 64, 64
          %188 = vsyncadd [#allocation6], %s187
          %s190 = sshll.u32 [#allocation7], 4
          %s191 = int_to_ptr.vmem [resolvable:$true] %s190
          %193 = dma.hbm_to_vmem [thread:$0]  %s2, 64, %s191, [#allocation6]
        $region20: #{tpu_custom_call.1} parent=11 // pred_fallthru
          _
        // Predicated region
        $region21: #{tpu_custom_call.1} parent=11 // pred_check
          %p194 = pneg %p108
        $region22: #{tpu_custom_call.1} parent=11 // pred_check_branch
          %196 = sbr.rel (%p194) target = $region24
        $region23: #{tpu_custom_call.1} parent=11 // pred_region
          %s198 = ssub.s32 4096, 4096
          %199 = vsyncadd [#allocation9], %s198
          %s200 = sshll.u32 [#allocation8], 4
          %s201 = int_to_ptr.vmem [resolvable:$true] %s200
          %206 = dma.hbm_to_vmem [thread:$0]  %s3, 4096, %s201, [#allocation9], 64, 64, 4
        $region24: #{tpu_custom_call.1} parent=11 // pred_fallthru
          _
        // Predicated region
        $region25: #{tpu_custom_call.1} parent=11 // pred_check
          %p207 = pneg %p129
        $region26: #{tpu_custom_call.1} parent=11 // pred_check_branch
          %209 = sbr.rel (%p207) target = $region28
        $region27: #{tpu_custom_call.1} parent=11 // pred_region
          _
        $region28: #{tpu_custom_call.1} parent=11 // pred_fallthru
          _
      $region12: #{tpu_custom_call.1} parent=5 // pred_fallthru
        _
      %p210 = scmp.lt.s32.totalorder %s19, 2
      // Predicated region
      $region29: #{tpu_custom_call.1} parent=5 // pred_check
        %p211 = pneg %p210
      $region30: #{tpu_custom_call.1} parent=5 // pred_check_branch
        %213 = sbr.rel (%p211) target = $region32
      $region31: #{tpu_custom_call.1} parent=5 // pred_region
        // Predicated region
        $region33: #{tpu_custom_call.1} parent=31 // pred_check
          %p214 = pneg %p39
        $region34: #{tpu_custom_call.1} parent=31 // pred_check_branch
          %216 = sbr.rel (%p214) target = $region36
        $region35: #{tpu_custom_call.1} parent=31 // pred_region
          %s217 = sand.u32 %s29, 1
          %s218 = scalar_lea.sflag [#allocation3], %s217
          %s219 = sand.u32 %s29, 1
          %s220 = smul.addr %s219, 4
          %s221 = scalar_lea.vmem [#allocation2], %s220
          %s223 = ssub.s32 64, 64
          %224 = vsyncadd %s218, %s223
          %s225 = smul.addr %s19, 64
          %s226 = scalar_lea.hbm %s0, %s225
          %s228 = sshll.u32 %s221, 4
          %s229 = int_to_ptr.vmem [resolvable:$true] %s228
          %231 = dma.hbm_to_vmem [thread:$0]  %s226, 64, %s229, %s218
        $region36: #{tpu_custom_call.1} parent=31 // pred_fallthru
          _
      $region32: #{tpu_custom_call.1} parent=5 // pred_fallthru
        _
      %p232 = scmp.le.s32.totalorder 1, %s19
      %p233 = scmp.lt.s32.totalorder %s19, 3
      %p234 = pnand %p232, %p233
      %p235 = pneg %p234
      // Predicated region
      $region37: #{tpu_custom_call.1} parent=5 // pred_check
        _
      $region38: #{tpu_custom_call.1} parent=5 // pred_check_branch
        %237 = sbr.rel (%p234) target = $region40
      $region39: #{tpu_custom_call.1} parent=5 // pred_region
        %s238 = ssub.s32 %s19, 1
        %s239 = sand.u32 %s32, 1
        %s240 = scalar_lea.sflag [#allocation3], %s239
        %s241 = sand.u32 %s32, 1
        %s242 = smul.addr %s241, 4
        %s243 = scalar_lea.vmem [#allocation2], %s242
        // Predicated region
        $region41: #{tpu_custom_call.1} parent=39 // pred_check
          %p244 = pneg %p45
        $region42: #{tpu_custom_call.1} parent=39 // pred_check_branch
          %246 = sbr.rel (%p244) target = $region44
        $region43: #{tpu_custom_call.1} parent=39 // pred_region
          %247 = dma.done %s240, 64
        $region44: #{tpu_custom_call.1} parent=39 // pred_fallthru
          _
        // Predicated region
        $region45: #{tpu_custom_call.1} parent=39 // pred_check
          %p248 = pneg %p66
        $region46: #{tpu_custom_call.1} parent=39 // pred_check_branch
          %250 = sbr.rel (%p248) target = $region48
        $region47: #{tpu_custom_call.1} parent=39 // pred_region
          %251 = dma.done [#allocation6], 4096
        $region48: #{tpu_custom_call.1} parent=39 // pred_fallthru
          _
        // Predicated region
        $region49: #{tpu_custom_call.1} parent=39 // pred_check
          %p252 = pneg %p87
        $region50: #{tpu_custom_call.1} parent=39 // pred_check_branch
          %254 = sbr.rel (%p252) target = $region52
        $region51: #{tpu_custom_call.1} parent=39 // pred_region
          %255 = dma.done [#allocation6], 64
        $region52: #{tpu_custom_call.1} parent=39 // pred_fallthru
          _
        // Predicated region
        $region53: #{tpu_custom_call.1} parent=39 // pred_check
          %p256 = pneg %p108
        $region54: #{tpu_custom_call.1} parent=39 // pred_check_branch
          %258 = sbr.rel (%p256) target = $region56
        $region55: #{tpu_custom_call.1} parent=39 // pred_region
          %259 = dma.done [#allocation9], 4096
        $region56: #{tpu_custom_call.1} parent=39 // pred_fallthru
          _
        %s260 = sand.u32 %s32, 1
        %s261 = scalar_lea.sflag [#allocation3], %s260
        %s262 = sand.u32 %s32, 1
        %s263 = smul.addr %s262, 4
        %s264 = scalar_lea.vmem [#allocation2], %s263
        %p265 = pneg %p45
        %p266 = pneg %p42
        %p267 = pneg %p66
        %p268 = pneg %p63
        %p269 = pneg %p87
        %p270 = pneg %p84
        %p271 = pneg %p108
        %p272 = pneg %p105
        %p273 = pneg %p129
        %p274 = pneg %p126
        %p275 = pneg %p155
        %p276 = pneg %p152
        %s277 = sand.u32 %s142, 1
        %s278 = scalar_lea.sflag [#allocation4], %s277
        %s279 = sand.u32 %s142, 1
        %s280 = smul.addr %s279, 4
        %s281 = scalar_lea.vmem [#allocation10], %s280
        %v283 = vld [vmem:[%s243] sm:$0xf]
        %v284 = vld [vmem:[#allocation5] sm:$0xff]
        %v285 = vld [vmem:[#allocation5 + $0x8] sm:$0xff]
        %v286 = vld [vmem:[#allocation5 + $0x10] sm:$0xff]
        %v287 = vld [vmem:[#allocation5 + $0x18] sm:$0xff]
        %v288 = vld [vmem:[#allocation5 + $0x20] sm:$0xff]
        %v289 = vld [vmem:[#allocation5 + $0x28] sm:$0xff]
        %v290 = vld [vmem:[#allocation5 + $0x30] sm:$0xff]
        %v291 = vld [vmem:[#allocation5 + $0x38] sm:$0xff]
        %v292 = vld [vmem:[#allocation5 + $0x40] sm:$0xff]
        %v293 = vld [vmem:[#allocation5 + $0x48] sm:$0xff]
        %v294 = vld [vmem:[#allocation5 + $0x50] sm:$0xff]
        %v295 = vld [vmem:[#allocation5 + $0x58] sm:$0xff]
        %v296 = vld [vmem:[#allocation5 + $0x60] sm:$0xff]
        %v297 = vld [vmem:[#allocation5 + $0x68] sm:$0xff]
        %v298 = vld [vmem:[#allocation5 + $0x70] sm:$0xff]
        %v299 = vld [vmem:[#allocation5 + $0x78] sm:$0xff]
        %v300 = vld [vmem:[#allocation5 + $0x80] sm:$0xff]
        %v301 = vld [vmem:[#allocation5 + $0x88] sm:$0xff]
        %v302 = vld [vmem:[#allocation5 + $0x90] sm:$0xff]
        %v303 = vld [vmem:[#allocation5 + $0x98] sm:$0xff]
        %v304 = vld [vmem:[#allocation5 + $0xa0] sm:$0xff]
        %v305 = vld [vmem:[#allocation5 + $0xa8] sm:$0xff]
        %v306 = vld [vmem:[#allocation5 + $0xb0] sm:$0xff]
        %v307 = vld [vmem:[#allocation5 + $0xb8] sm:$0xff]
        %v308 = vld [vmem:[#allocation5 + $0xc0] sm:$0xff]
        %v309 = vld [vmem:[#allocation5 + $0xc8] sm:$0xff]
        %v310 = vld [vmem:[#allocation5 + $0xd0] sm:$0xff]
        %v311 = vld [vmem:[#allocation5 + $0xd8] sm:$0xff]
        %v312 = vld [vmem:[#allocation5 + $0xe0] sm:$0xff]
        %v313 = vld [vmem:[#allocation5 + $0xe8] sm:$0xff]
        %v314 = vld [vmem:[#allocation5 + $0xf0] sm:$0xff]
        %v315 = vld [vmem:[#allocation5 + $0xf8] sm:$0xff]
        %v348 = vunpack.c.l.b16 %v284
        %v349 = vunpack.c.h.b16 %v284
        %v350 = vunpack.c.l.b16 %v285
        %v351 = vunpack.c.h.b16 %v285
        %v352 = vunpack.c.l.b16 %v286
        %v353 = vunpack.c.h.b16 %v286
        %v354 = vunpack.c.l.b16 %v287
        %v355 = vunpack.c.h.b16 %v287
        %v356 = vunpack.c.l.b16 %v288
        %v357 = vunpack.c.h.b16 %v288
        %v358 = vunpack.c.l.b16 %v289
        %v359 = vunpack.c.h.b16 %v289
        %v360 = vunpack.c.l.b16 %v290
        %v361 = vunpack.c.h.b16 %v290
        %v362 = vunpack.c.l.b16 %v291
        %v363 = vunpack.c.h.b16 %v291
        %v364 = vunpack.c.l.b16 %v292
        %v365 = vunpack.c.h.b16 %v292
        %v366 = vunpack.c.l.b16 %v293
        %v367 = vunpack.c.h.b16 %v293
        %v368 = vunpack.c.l.b16 %v294
        %v369 = vunpack.c.h.b16 %v294
        %v370 = vunpack.c.l.b16 %v295
        %v371 = vunpack.c.h.b16 %v295
        %v372 = vunpack.c.l.b16 %v296
        %v373 = vunpack.c.h.b16 %v296
        %v374 = vunpack.c.l.b16 %v297
        %v375 = vunpack.c.h.b16 %v297
        %v376 = vunpack.c.l.b16 %v298
        %v377 = vunpack.c.h.b16 %v298
        %v378 = vunpack.c.l.b16 %v299
        %v379 = vunpack.c.h.b16 %v299
        %v380 = vunpack.c.l.b16 %v300
        %v381 = vunpack.c.h.b16 %v300
        %v382 = vunpack.c.l.b16 %v301
        %v383 = vunpack.c.h.b16 %v301
        %v384 = vunpack.c.l.b16 %v302
        %v385 = vunpack.c.h.b16 %v302
        %v386 = vunpack.c.l.b16 %v303
        %v387 = vunpack.c.h.b16 %v303
        %v388 = vunpack.c.l.b16 %v304
        %v389 = vunpack.c.h.b16 %v304
        %v390 = vunpack.c.l.b16 %v305
        %v391 = vunpack.c.h.b16 %v305
        %v392 = vunpack.c.l.b16 %v306
        %v393 = vunpack.c.h.b16 %v306
        %v394 = vunpack.c.l.b16 %v307
        %v395 = vunpack.c.h.b16 %v307
        %v396 = vunpack.c.l.b16 %v308
        %v397 = vunpack.c.h.b16 %v308
        %v398 = vunpack.c.l.b16 %v309
        %v399 = vunpack.c.h.b16 %v309
        %v400 = vunpack.c.l.b16 %v310
        %v401 = vunpack.c.h.b16 %v310
        %v402 = vunpack.c.l.b16 %v311
        %v403 = vunpack.c.h.b16 %v311
        %v404 = vunpack.c.l.b16 %v312
        %v405 = vunpack.c.h.b16 %v312
        %v406 = vunpack.c.l.b16 %v313
        %v407 = vunpack.c.h.b16 %v313
        %v408 = vunpack.c.l.b16 %v314
        %v409 = vunpack.c.h.b16 %v314
        %v410 = vunpack.c.l.b16 %v315
        %v411 = vunpack.c.h.b16 %v315
        %v412 = vpack.c.b16 %v352, %v348
        %v413 = vpack.c.b16 %v353, %v349
        %v414 = vpack.c.b16 %v354, %v350
        %v415 = vpack.c.b16 %v355, %v351
        %v416 = vpack.c.b16 %v360, %v356
        %v417 = vpack.c.b16 %v361, %v357
        %v418 = vpack.c.b16 %v362, %v358
        %v419 = vpack.c.b16 %v363, %v359
        %v420 = vpack.c.b16 %v368, %v364
        %v421 = vpack.c.b16 %v369, %v365
        %v422 = vpack.c.b16 %v370, %v366
        %v423 = vpack.c.b16 %v371, %v367
        %v424 = vpack.c.b16 %v376, %v372
        %v425 = vpack.c.b16 %v377, %v373
        %v426 = vpack.c.b16 %v378, %v374
        %v427 = vpack.c.b16 %v379, %v375
        %v428 = vpack.c.b16 %v384, %v380
        %v429 = vpack.c.b16 %v385, %v381
        %v430 = vpack.c.b16 %v386, %v382
        %v431 = vpack.c.b16 %v387, %v383
        %v432 = vpack.c.b16 %v392, %v388
        %v433 = vpack.c.b16 %v393, %v389
        %v434 = vpack.c.b16 %v394, %v390
        %v435 = vpack.c.b16 %v395, %v391
        %v436 = vpack.c.b16 %v400, %v396
        %v437 = vpack.c.b16 %v401, %v397
        %v438 = vpack.c.b16 %v402, %v398
        %v439 = vpack.c.b16 %v403, %v399
        %v440 = vpack.c.b16 %v408, %v404
        %v441 = vpack.c.b16 %v409, %v405
        %v442 = vpack.c.b16 %v410, %v406
        %v443 = vpack.c.b16 %v411, %v407
        %476 = vmatprep.subr.bf16.mxu0 %v441
        %477 = vmatpush1.bf16.msra.mxu0 %v440
        %478 = vmatprep.subr.bf16.mxu0 %v437
        %479 = vmatpush1.bf16.msra.mxu0 %v436
        %480 = vmatprep.subr.bf16.mxu0 %v433
        %481 = vmatpush1.bf16.msra.mxu0 %v432
        %482 = vmatprep.subr.bf16.mxu0 %v429
        %483 = vmatpush1.bf16.msra.mxu0 %v428
        %484 = vmatprep.subr.bf16.mxu0 %v425
        %485 = vmatpush1.bf16.msra.mxu0 %v424
        %486 = vmatprep.subr.bf16.mxu0 %v421
        %487 = vmatpush1.bf16.msra.mxu0 %v420
        %488 = vmatprep.subr.bf16.mxu0 %v417
        %489 = vmatpush1.bf16.msra.mxu0 %v416
        %490 = vmatprep.subr.bf16.mxu0 %v413
        %491 = vmatpush1.bf16.msra.mxu0 %v412
        %492 = vmatprep.subr.bf16.mxu0 0
        %493 = vmatpush2.bf16.msra.mxu0 0
        %494 = vmatprep.subr.bf16.mxu0 0
        %495 = vmatpush2.bf16.msra.mxu0 0
        %496 = vmatprep.subr.bf16.mxu0 0
        %497 = vmatpush2.bf16.msra.mxu0 0
        %498 = vmatprep.subr.bf16.mxu0 0
        %499 = vmatpush2.bf16.msra.mxu0 0
        %500 = vmatprep.subr.bf16.mxu0 0
        %501 = vmatpush2.bf16.msra.mxu0 0
        %502 = vmatprep.subr.bf16.mxu0 0
        %503 = vmatpush2.bf16.msra.mxu0 0
        %504 = vmatprep.subr.bf16.mxu0 0
        %505 = vmatpush2.bf16.msra.mxu0 0
        %506 = vmatprep.subr.bf16.mxu0 0
        %507 = vmatpush2.bf16.msra.mxu0 0
        %508 = vmatprep.mubr.bf16.mxu0 0
        %509 = vmatmul.mubr.bf16.gmra.mxu0 %v283
        %v510 = vpop.f32.mrf.mxu0
        %v511 = vadd.f32 0.0, %v510
        %v512 = vpop.f32.mrf.mxu0
        %v513 = vadd.f32 0.0, %v512
        %v514 = vpop.f32.mrf.mxu0
        %v515 = vpop.f32.mrf.mxu0
        %516 = vdwg.mxu0
        %517 = vmatprep.subr.bf16.mxu0 %v443
        %518 = vmatpush1.bf16.msra.mxu0 %v442
        %519 = vmatprep.subr.bf16.mxu0 %v439
        %520 = vmatpush1.bf16.msra.mxu0 %v438
        %521 = vmatprep.subr.bf16.mxu0 %v435
        %522 = vmatpush1.bf16.msra.mxu0 %v434
        %523 = vmatprep.subr.bf16.mxu0 %v431
        %524 = vmatpush1.bf16.msra.mxu0 %v430
        %525 = vmatprep.subr.bf16.mxu0 %v427
        %526 = vmatpush1.bf16.msra.mxu0 %v426
        %527 = vmatprep.subr.bf16.mxu0 %v423
        %528 = vmatpush1.bf16.msra.mxu0 %v422
        %529 = vmatprep.subr.bf16.mxu0 %v419
        %530 = vmatpush1.bf16.msra.mxu0 %v418
        %531 = vmatprep.subr.bf16.mxu0 %v415
        %532 = vmatpush1.bf16.msra.mxu0 %v414
        %533 = vmatprep.subr.bf16.mxu0 0
        %534 = vmatpush2.bf16.msra.mxu0 0
        %535 = vmatprep.subr.bf16.mxu0 0
        %536 = vmatpush2.bf16.msra.mxu0 0
        %537 = vmatprep.subr.bf16.mxu0 0
        %538 = vmatpush2.bf16.msra.mxu0 0
        %539 = vmatprep.subr.bf16.mxu0 0
        %540 = vmatpush2.bf16.msra.mxu0 0
        %541 = vmatprep.subr.bf16.mxu0 0
        %542 = vmatpush2.bf16.msra.mxu0 0
        %543 = vmatprep.subr.bf16.mxu0 0
        %544 = vmatpush2.bf16.msra.mxu0 0
        %545 = vmatprep.subr.bf16.mxu0 0
        %546 = vmatpush2.bf16.msra.mxu0 0
        %547 = vmatprep.subr.bf16.mxu0 0
        %548 = vmatpush2.bf16.msra.mxu0 0
        %549 = vmatprep.mubr.bf16.mxu0 0
        %550 = vmatmul.mubr.bf16.gmra.mxu0 %v283
        %v551 = vpop.f32.mrf.mxu0
        %v552 = vadd.f32 0.0, %v551
        %v553 = vpop.f32.mrf.mxu0
        %v554 = vadd.f32 0.0, %v553
        %v555 = vpop.f32.mrf.mxu0
        %v556 = vpop.f32.mrf.mxu0
        %557 = vdwg.mxu0
        %v558 = vpack.c.bf16 %v511, %v511
        %v559 = vpack.c.bf16 %v513, %v513
        %v560 = vpack.c.bf16 %v552, %v552
        %v561 = vpack.c.bf16 %v554, %v554
        %v562 = vld [vmem:[#allocation7] sm:$0xf]
        %v564 = vlaneseq
        %v565 = vshrl.u32 %v564, 7
        %v566 = vsub.s32 0, %v565
        %v567 = vrot.slane %v562, %v566
        %v568 = vlaneseq
        %v569 = vshrl.u32 %v568, 7
        %v570 = vsub.s32 1, %v569
        %v571 = vrot.slane %v562, %v570
        %v572 = vlaneseq
        %v573 = vshrl.u32 %v572, 7
        %v574 = vsub.s32 2, %v573
        %v575 = vrot.slane %v562, %v574
        %v576 = vlaneseq
        %v577 = vshrl.u32 %v576, 7
        %v578 = vsub.s32 3, %v577
        %v579 = vrot.slane %v562, %v578
        %v584 = vpack.c.bf16 %v567, %v567
        %v585 = vpack.c.bf16 %v571, %v571
        %v586 = vpack.c.bf16 %v575, %v575
        %v587 = vpack.c.bf16 %v579, %v579
        %v589 = vpack.i.b16 %v584, %v584
        %v591 = vlaneseq
        %v592 = vshrl.u32 %v591, 7
        %v593 = vsub.s32 0, %v592
        %v594 = vrot.slane %v589, %v593
        %v596 = vpack.i.b16 %v585, %v585
        %v598 = vlaneseq
        %v599 = vshrl.u32 %v598, 7
        %v600 = vsub.s32 0, %v599
        %v601 = vrot.slane %v596, %v600
        %v603 = vpack.i.b16 %v586, %v586
        %v605 = vlaneseq
        %v606 = vshrl.u32 %v605, 7
        %v607 = vsub.s32 0, %v606
        %v608 = vrot.slane %v603, %v607
        %v610 = vpack.i.b16 %v587, %v587
        %v612 = vlaneseq
        %v613 = vshrl.u32 %v612, 7
        %v614 = vsub.s32 0, %v613
        %v615 = vrot.slane %v610, %v614
        %v616 = vadd.bf16 %v558, %v594
        %v617 = vadd.bf16 %v559, %v601
        %v618 = vadd.bf16 %v560, %v608
        %v619 = vadd.bf16 %v561, %v615
        %v620 = vmax.bf16 %v616, 0
        %v621 = vmax.bf16 %v617, 0
        %v622 = vmax.bf16 %v618, 0
        %v623 = vmax.bf16 %v619, 0
        %v624 = vld [vmem:[#allocation8] sm:$0xf]
        %v625 = vld [vmem:[#allocation8 + $0x4] sm:$0xf]
        %v626 = vld [vmem:[#allocation8 + $0x8] sm:$0xf]
        %v627 = vld [vmem:[#allocation8 + $0xc] sm:$0xf]
        %v628 = vld [vmem:[#allocation8 + $0x10] sm:$0xf]
        %v629 = vld [vmem:[#allocation8 + $0x14] sm:$0xf]
        %v630 = vld [vmem:[#allocation8 + $0x18] sm:$0xf]
        %v631 = vld [vmem:[#allocation8 + $0x1c] sm:$0xf]
        %v632 = vld [vmem:[#allocation8 + $0x20] sm:$0xf]
        %v633 = vld [vmem:[#allocation8 + $0x24] sm:$0xf]
        %v634 = vld [vmem:[#allocation8 + $0x28] sm:$0xf]
        %v635 = vld [vmem:[#allocation8 + $0x2c] sm:$0xf]
        %v636 = vld [vmem:[#allocation8 + $0x30] sm:$0xf]
        %v637 = vld [vmem:[#allocation8 + $0x34] sm:$0xf]
        %v638 = vld [vmem:[#allocation8 + $0x38] sm:$0xf]
        %v639 = vld [vmem:[#allocation8 + $0x3c] sm:$0xf]
        %v640 = vld [vmem:[#allocation8 + $0x40] sm:$0xf]
        %v641 = vld [vmem:[#allocation8 + $0x44] sm:$0xf]
        %v642 = vld [vmem:[#allocation8 + $0x48] sm:$0xf]
        %v643 = vld [vmem:[#allocation8 + $0x4c] sm:$0xf]
        %v644 = vld [vmem:[#allocation8 + $0x50] sm:$0xf]
        %v645 = vld [vmem:[#allocation8 + $0x54] sm:$0xf]
        %v646 = vld [vmem:[#allocation8 + $0x58] sm:$0xf]
        %v647 = vld [vmem:[#allocation8 + $0x5c] sm:$0xf]
        %v648 = vld [vmem:[#allocation8 + $0x60] sm:$0xf]
        %v649 = vld [vmem:[#allocation8 + $0x64] sm:$0xf]
        %v650 = vld [vmem:[#allocation8 + $0x68] sm:$0xf]
        %v651 = vld [vmem:[#allocation8 + $0x6c] sm:$0xf]
        %v652 = vld [vmem:[#allocation8 + $0x70] sm:$0xf]
        %v653 = vld [vmem:[#allocation8 + $0x74] sm:$0xf]
        %v654 = vld [vmem:[#allocation8 + $0x78] sm:$0xf]
        %v655 = vld [vmem:[#allocation8 + $0x7c] sm:$0xf]
        %v656 = vld [vmem:[#allocation8 + $0x80] sm:$0xf]
        %v657 = vld [vmem:[#allocation8 + $0x84] sm:$0xf]
        %v658 = vld [vmem:[#allocation8 + $0x88] sm:$0xf]
        %v659 = vld [vmem:[#allocation8 + $0x8c] sm:$0xf]
        %v660 = vld [vmem:[#allocation8 + $0x90] sm:$0xf]
        %v661 = vld [vmem:[#allocation8 + $0x94] sm:$0xf]
        %v662 = vld [vmem:[#allocation8 + $0x98] sm:$0xf]
        %v663 = vld [vmem:[#allocation8 + $0x9c] sm:$0xf]
        %v664 = vld [vmem:[#allocation8 + $0xa0] sm:$0xf]
        %v665 = vld [vmem:[#allocation8 + $0xa4] sm:$0xf]
        %v666 = vld [vmem:[#allocation8 + $0xa8] sm:$0xf]
        %v667 = vld [vmem:[#allocation8 + $0xac] sm:$0xf]
        %v668 = vld [vmem:[#allocation8 + $0xb0] sm:$0xf]
        %v669 = vld [vmem:[#allocation8 + $0xb4] sm:$0xf]
        %v670 = vld [vmem:[#allocation8 + $0xb8] sm:$0xf]
        %v671 = vld [vmem:[#allocation8 + $0xbc] sm:$0xf]
        %v672 = vld [vmem:[#allocation8 + $0xc0] sm:$0xf]
        %v673 = vld [vmem:[#allocation8 + $0xc4] sm:$0xf]
        %v674 = vld [vmem:[#allocation8 + $0xc8] sm:$0xf]
        %v675 = vld [vmem:[#allocation8 + $0xcc] sm:$0xf]
        %v676 = vld [vmem:[#allocation8 + $0xd0] sm:$0xf]
        %v677 = vld [vmem:[#allocation8 + $0xd4] sm:$0xf]
        %v678 = vld [vmem:[#allocation8 + $0xd8] sm:$0xf]
        %v679 = vld [vmem:[#allocation8 + $0xdc] sm:$0xf]
        %v680 = vld [vmem:[#allocation8 + $0xe0] sm:$0xf]
        %v681 = vld [vmem:[#allocation8 + $0xe4] sm:$0xf]
        %v682 = vld [vmem:[#allocation8 + $0xe8] sm:$0xf]
        %v683 = vld [vmem:[#allocation8 + $0xec] sm:$0xf]
        %v684 = vld [vmem:[#allocation8 + $0xf0] sm:$0xf]
        %v685 = vld [vmem:[#allocation8 + $0xf4] sm:$0xf]
        %v686 = vld [vmem:[#allocation8 + $0xf8] sm:$0xf]
        %v687 = vld [vmem:[#allocation8 + $0xfc] sm:$0xf]
        %v688 = vld [vmem:[%s4] sm:$0x1]
        %v690 = vlaneseq
        %v691 = vshrl.u32 %v690, 7
        %v692 = vsub.s32 0, %v691
        %v693 = vrot.slane %v688, %v692
        %v759 = vunpack.c.l.b16 %v624
        %v760 = vunpack.c.l.b16 %v625
        %v761 = vunpack.c.l.b16 %v626
        %v762 = vunpack.c.l.b16 %v627
        %v763 = vunpack.c.l.b16 %v628
        %v764 = vunpack.c.l.b16 %v629
        %v765 = vunpack.c.l.b16 %v630
        %v766 = vunpack.c.l.b16 %v631
        %v767 = vunpack.c.l.b16 %v632
        %v768 = vunpack.c.l.b16 %v633
        %v769 = vunpack.c.l.b16 %v634
        %v770 = vunpack.c.l.b16 %v635
        %v771 = vunpack.c.l.b16 %v636
        %v772 = vunpack.c.l.b16 %v637
        %v773 = vunpack.c.l.b16 %v638
        %v774 = vunpack.c.l.b16 %v639
        %v775 = vunpack.c.l.b16 %v640
        %v776 = vunpack.c.l.b16 %v641
        %v777 = vunpack.c.l.b16 %v642
        %v778 = vunpack.c.l.b16 %v643
        %v779 = vunpack.c.l.b16 %v644
        %v780 = vunpack.c.l.b16 %v645
        %v781 = vunpack.c.l.b16 %v646
        %v782 = vunpack.c.l.b16 %v647
        %v783 = vunpack.c.l.b16 %v648
        %v784 = vunpack.c.l.b16 %v649
        %v785 = vunpack.c.l.b16 %v650
        %v786 = vunpack.c.l.b16 %v651
        %v787 = vunpack.c.l.b16 %v652
        %v788 = vunpack.c.l.b16 %v653
        %v789 = vunpack.c.l.b16 %v654
        %v790 = vunpack.c.l.b16 %v655
        %v791 = vunpack.c.l.b16 %v656
        %v792 = vunpack.c.l.b16 %v657
        %v793 = vunpack.c.l.b16 %v658
        %v794 = vunpack.c.l.b16 %v659
        %v795 = vunpack.c.l.b16 %v660
        %v796 = vunpack.c.l.b16 %v661
        %v797 = vunpack.c.l.b16 %v662
        %v798 = vunpack.c.l.b16 %v663
        %v799 = vunpack.c.l.b16 %v664
        %v800 = vunpack.c.l.b16 %v665
        %v801 = vunpack.c.l.b16 %v666
        %v802 = vunpack.c.l.b16 %v667
        %v803 = vunpack.c.l.b16 %v668
        %v804 = vunpack.c.l.b16 %v669
        %v805 = vunpack.c.l.b16 %v670
        %v806 = vunpack.c.l.b16 %v671
        %v807 = vunpack.c.l.b16 %v672
        %v808 = vunpack.c.l.b16 %v673
        %v809 = vunpack.c.l.b16 %v674
        %v810 = vunpack.c.l.b16 %v675
        %v811 = vunpack.c.l.b16 %v676
        %v812 = vunpack.c.l.b16 %v677
        %v813 = vunpack.c.l.b16 %v678
        %v814 = vunpack.c.l.b16 %v679
        %v815 = vunpack.c.l.b16 %v680
        %v816 = vunpack.c.l.b16 %v681
        %v817 = vunpack.c.l.b16 %v682
        %v818 = vunpack.c.l.b16 %v683
        %v819 = vunpack.c.l.b16 %v684
        %v820 = vunpack.c.l.b16 %v685
        %v821 = vunpack.c.l.b16 %v686
        %v822 = vunpack.c.l.b16 %v687
        %v823 = vpack.c.b16 %v760, %v759
        %v824 = vpack.c.b16 %v762, %v761
        %v825 = vpack.c.b16 %v764, %v763
        %v826 = vpack.c.b16 %v766, %v765
        %v827 = vpack.c.b16 %v768, %v767
        %v828 = vpack.c.b16 %v770, %v769
        %v829 = vpack.c.b16 %v772, %v771
        %v830 = vpack.c.b16 %v774, %v773
        %v831 = vpack.c.b16 %v776, %v775
        %v832 = vpack.c.b16 %v778, %v777
        %v833 = vpack.c.b16 %v780, %v779
        %v834 = vpack.c.b16 %v782, %v781
        %v835 = vpack.c.b16 %v784, %v783
        %v836 = vpack.c.b16 %v786, %v785
        %v837 = vpack.c.b16 %v788, %v787
        %v838 = vpack.c.b16 %v790, %v789
        %v839 = vpack.c.b16 %v792, %v791
        %v840 = vpack.c.b16 %v794, %v793
        %v841 = vpack.c.b16 %v796, %v795
        %v842 = vpack.c.b16 %v798, %v797
        %v843 = vpack.c.b16 %v800, %v799
        %v844 = vpack.c.b16 %v802, %v801
        %v845 = vpack.c.b16 %v804, %v803
        %v846 = vpack.c.b16 %v806, %v805
        %v847 = vpack.c.b16 %v808, %v807
        %v848 = vpack.c.b16 %v810, %v809
        %v849 = vpack.c.b16 %v812, %v811
        %v850 = vpack.c.b16 %v814, %v813
        %v851 = vpack.c.b16 %v816, %v815
        %v852 = vpack.c.b16 %v818, %v817
        %v853 = vpack.c.b16 %v820, %v819
        %v854 = vpack.c.b16 %v822, %v821
        %887 = vmatprep.subr.bf16.mxu0 0
        %888 = vmatpush1.bf16.msra.mxu0 %v830
        %889 = vmatprep.subr.bf16.mxu0 0
        %890 = vmatpush1.bf16.msra.mxu0 %v829
        %891 = vmatprep.subr.bf16.mxu0 0
        %892 = vmatpush1.bf16.msra.mxu0 %v828
        %893 = vmatprep.subr.bf16.mxu0 0
        %894 = vmatpush1.bf16.msra.mxu0 %v827
        %895 = vmatprep.subr.bf16.mxu0 0
        %896 = vmatpush1.bf16.msra.mxu0 %v826
        %897 = vmatprep.subr.bf16.mxu0 0
        %898 = vmatpush1.bf16.msra.mxu0 %v825
        %899 = vmatprep.subr.bf16.mxu0 0
        %900 = vmatpush1.bf16.msra.mxu0 %v824
        %901 = vmatprep.subr.bf16.mxu0 0
        %902 = vmatpush1.bf16.msra.mxu0 %v823
        %903 = vmatprep.subr.bf16.mxu0 0
        %904 = vmatpush2.bf16.msra.mxu0 %v838
        %905 = vmatprep.subr.bf16.mxu0 0
        %906 = vmatpush2.bf16.msra.mxu0 %v837
        %907 = vmatprep.subr.bf16.mxu0 0
        %908 = vmatpush2.bf16.msra.mxu0 %v836
        %909 = vmatprep.subr.bf16.mxu0 0
        %910 = vmatpush2.bf16.msra.mxu0 %v835
        %911 = vmatprep.subr.bf16.mxu0 0
        %912 = vmatpush2.bf16.msra.mxu0 %v834
        %913 = vmatprep.subr.bf16.mxu0 0
        %914 = vmatpush2.bf16.msra.mxu0 %v833
        %915 = vmatprep.subr.bf16.mxu0 0
        %916 = vmatpush2.bf16.msra.mxu0 %v832
        %917 = vmatprep.subr.bf16.mxu0 0
        %918 = vmatpush2.bf16.msra.mxu0 %v831
        %919 = vmatprep.mubr.bf16.mxu0 %v621
        %920 = vmatmul.mubr.bf16.gmra.mxu0 %v620
        %v921 = vpop.f32.mrf.mxu0
        %v922 = vadd.f32 %v693, %v921
        %v923 = vpop.f32.mrf.mxu0
        %v924 = vpop.f32.mrf.mxu0
        %v925 = vpop.f32.mrf.mxu0
        %926 = vdwg.mxu0
        %927 = vmatprep.subr.bf16.mxu0 0
        %928 = vmatpush1.bf16.msra.mxu0 %v846
        %929 = vmatprep.subr.bf16.mxu0 0
        %930 = vmatpush1.bf16.msra.mxu0 %v845
        %931 = vmatprep.subr.bf16.mxu0 0
        %932 = vmatpush1.bf16.msra.mxu0 %v844
        %933 = vmatprep.subr.bf16.mxu0 0
        %934 = vmatpush1.bf16.msra.mxu0 %v843
        %935 = vmatprep.subr.bf16.mxu0 0
        %936 = vmatpush1.bf16.msra.mxu0 %v842
        %937 = vmatprep.subr.bf16.mxu0 0
        %938 = vmatpush1.bf16.msra.mxu0 %v841
        %939 = vmatprep.subr.bf16.mxu0 0
        %940 = vmatpush1.bf16.msra.mxu0 %v840
        %941 = vmatprep.subr.bf16.mxu0 0
        %942 = vmatpush1.bf16.msra.mxu0 %v839
        %943 = vmatprep.subr.bf16.mxu0 0
        %944 = vmatpush2.bf16.msra.mxu0 %v854
        %945 = vmatprep.subr.bf16.mxu0 0
        %946 = vmatpush2.bf16.msra.mxu0 %v853
        %947 = vmatprep.subr.bf16.mxu0 0
        %948 = vmatpush2.bf16.msra.mxu0 %v852
        %949 = vmatprep.subr.bf16.mxu0 0
        %950 = vmatpush2.bf16.msra.mxu0 %v851
        %951 = vmatprep.subr.bf16.mxu0 0
        %952 = vmatpush2.bf16.msra.mxu0 %v850
        %953 = vmatprep.subr.bf16.mxu0 0
        %954 = vmatpush2.bf16.msra.mxu0 %v849
        %955 = vmatprep.subr.bf16.mxu0 0
        %956 = vmatpush2.bf16.msra.mxu0 %v848
        %957 = vmatprep.subr.bf16.mxu0 0
        %958 = vmatpush2.bf16.msra.mxu0 %v847
        %959 = vmatprep.mubr.bf16.mxu0 %v623
        %960 = vmatmul.mubr.bf16.gmra.mxu0 %v622
        %v961 = vpop.f32.mrf.mxu0
        %v962 = vadd.f32 %v922, %v961
        %v963 = vpop.f32.mrf.mxu0
        %v964 = vpop.f32.mrf.mxu0
        %v965 = vpop.f32.mrf.mxu0
        %966 = vdwg.mxu0
        %v967 = vpack.c.bf16 %v962, %v962
        %968 = vst [vmem:[%s281] sm:$0xf] %v967
        %s969 = sand.u32 %s142, 1
        %s970 = scalar_lea.sflag [#allocation4], %s969
        %s971 = sand.u32 %s142, 1
        %s972 = smul.addr %s971, 4
        %s973 = scalar_lea.vmem [#allocation10], %s972
        // Predicated region
        $region57: #{tpu_custom_call.1} parent=39 // pred_check
          %p974 = pneg %p152
        $region58: #{tpu_custom_call.1} parent=39 // pred_check_branch
          %976 = sbr.rel (%p974) target = $region60
        $region59: #{tpu_custom_call.1} parent=39 // pred_region
          %s978 = ssub.s32 64, 64
          %979 = vsyncadd %s970, %s978
          %s980 = smul.addr %s24, 64
          %s981 = scalar_lea.hbm %s5, %s980
          %s983 = sshll.u32 %s973, 4
          %s984 = int_to_ptr.vmem [resolvable:$true] %s983
          %986 = dma.vmem_to_hbm [thread:$0]  %s984, 64, %s981, %s970
        $region60: #{tpu_custom_call.1} parent=39 // pred_fallthru
          _
      $region40: #{tpu_custom_call.1} parent=5 // pred_fallthru
        _
      %p987 = scmp.le.s32.totalorder 2, %s19
      // Predicated region
      $region61: #{tpu_custom_call.1} parent=5 // pred_check
        %p988 = pneg %p987
      $region62: #{tpu_custom_call.1} parent=5 // pred_check_branch
        %990 = sbr.rel (%p988) target = $region64
      $region63: #{tpu_custom_call.1} parent=5 // pred_region
        %s991 = ssub.s32 %s19, 2
        // Predicated region
        $region65: #{tpu_custom_call.1} parent=63 // pred_check
          %p992 = pneg %p158
        $region66: #{tpu_custom_call.1} parent=63 // pred_check_branch
          %994 = sbr.rel (%p992) target = $region68
        $region67: #{tpu_custom_call.1} parent=63 // pred_region
          %s995 = sand.u32 %s143, 1
          %s996 = scalar_lea.sflag [#allocation4], %s995
          %s997 = sand.u32 %s143, 1
          %s998 = smul.addr %s997, 4
          %s999 = scalar_lea.vmem [#allocation10], %s998
          %1000 = dma.done %s996, 64
        $region68: #{tpu_custom_call.1} parent=63 // pred_fallthru
          _
      $region64: #{tpu_custom_call.1} parent=5 // pred_fallthru
        _
    $region6: #{tpu_custom_call.1} parent=1 // loop_footer
      %s23 = sadd.s32 1, %s19
    $region7: #{tpu_custom_call.1} parent=1 // loop_footer_branch
      %18 = sbr.rel target = $region3
    $region8: #{tpu_custom_call.1} parent=1 // loop_exit
      _
    %1001 = vsyncpa [#allocation3], 1
    %s1002 = scalar_lea.sflag [#allocation3], 1
    %1003 = vsyncpa %s1002, 1
    %1004 = vsyncpa [#allocation6], 1
    %1005 = vsyncpa [#allocation9], 1
    %1006 = vsyncpa [#allocation4], 1
    %s1007 = scalar_lea.sflag [#allocation4], 1
    %1008 = vsyncpa %s1007, 1

</llo_original>
